<compile_context>
chip_gen: v7x
topology: tpu7x:2x2x1
jax: 0.10.0
libtpu: 0.0.40
codegen_flags: <defaults>
</compile_context>

<pallas_src>
import jax
import jax.numpy as jnp
from jax.experimental import pallas as pl
from jax.experimental.pallas import tpu as pltpu


# ----------------------------- kernels --------------------------------------


def _attention_kernel_dot(x_ref, w_ref, b_ref, o_ref):
    """One image per block: x_ref (1, C, T). Channel reduce = (1,C)@(C,T) MXU dot."""
    x = x_ref[0]                                    # (C, T), input dtype
    w = w_ref[...].astype(x.dtype)                  # (1, C)
    # 1x1 conv over channels: single MXU contraction, f32 accumulation.
    y = jax.lax.dot_general(w, x, (((1,), (0,)), ((), ())),
                            preferred_element_type=jnp.float32)            # (1, T) f32
    y = y + b_ref[0]
    gate = (jnp.tanh(y) * jax.nn.sigmoid(y)).astype(x.dtype)               # (1, T)
    o_ref[0] = x * gate                             # broadcast over channels (sublanes)


def _attention_kernel_vpu(x_ref, w_ref, b_ref, o_ref):
    """Several images per block: x_ref (nb, C, T); used only when C*T is small.
    VPU multiply (widened to f32) + sublane reduce over C."""
    x = x_ref[...]                                  # (nb, C, T), input dtype
    xw = x.astype(jnp.float32) * w_ref[...]         # (nb, C, T) f32; w_ref is (C, 1) f32
    y = jnp.sum(xw, axis=1, keepdims=True) + b_ref[0]                      # (nb, 1, T) f32
    gate = (jnp.tanh(y) * jax.nn.sigmoid(y)).astype(x.dtype)               # (nb, 1, T)
    o_ref[...] = x * gate


# ----------------------------- wrapper ---------------------------------------


def _choose_tiles(N, C, HW, itemsize, *, target_bytes, min_grid_steps=8):
    """Pick (nb, t) so a block is ~target_bytes and the grid keeps enough steps."""
    per_image = C * HW * itemsize
    if per_image >= target_bytes // 2:
        # Tile the spatial (lane) axis; one image per block.
        nb = 1
        t = max(128, (target_bytes // (C * itemsize)) // 128 * 128)
        # Keep enough grid steps for pipelining / v7x's two cores.
        want = max(2 if N == 1 else 1, pl.cdiv(min_grid_steps, N))
        if pl.cdiv(HW, t) < want:
            t = max(128, (HW // want) // 128 * 128)
        if t >= HW:                                  # full-extent block: always legal
            t = HW
    else:
        # Whole (C, HW) slab is small: block over the batch axis instead.
        t = HW
        nb = max(1, min(N, target_bytes // max(per_image, 1)))
        if pl.cdiv(N, nb) < min_grid_steps:
            nb = max(1, N // min_grid_steps)
    return nb, t


def attention_forward(x_nchw, w, b, *, target_block_bytes=2 << 20):
    """x_nchw: (N, C, H, W); w: (1, C, 1, 1); b: (1,) — matches nn.Conv2d(C, 1, 1)."""
    N, C, H, W = x_nchw.shape
    HW = H * W
    x = x_nchw.reshape(N, C, HW)                     # metadata-only: HW stays the lane axis
    itemsize = jnp.dtype(x.dtype).itemsize

    nb, t = _choose_tiles(N, C, HW, itemsize, target_bytes=target_block_bytes)
    grid = (pl.cdiv(N, nb), pl.cdiv(HW, t))

    block_bytes = nb * C * t * itemsize
    # Headroom for double-buffered in/out blocks + in-kernel f32 temps; safe on
    # v5e/v6e (128 MiB physical) and v7x (64 MiB physical per TensorCore).
    vmem_limit = int(min(max(12 * block_bytes + (4 << 20), 16 << 20), 48 << 20))

    b_s = b.reshape(1).astype(jnp.float32)           # bias scalar -> SMEM

    if nb == 1:
        kernel = _attention_kernel_dot
        w_arg = w.reshape(1, C).astype(jnp.float32)  # weight row for the MXU dot
        w_spec = pl.BlockSpec((1, C), lambda n, i: (0, 0))
    else:
        kernel = _attention_kernel_vpu
        w_arg = w.reshape(C, 1).astype(jnp.float32)  # per-channel scale column
        w_spec = pl.BlockSpec((C, 1), lambda n, i: (0, 0))

    out = pl.pallas_call(
        kernel,
        out_shape=jax.ShapeDtypeStruct((N, C, HW), x.dtype),
        grid_spec=pltpu.PrefetchScalarGridSpec(
            num_scalar_prefetch=0,
            grid=grid,
            in_specs=[
                pl.BlockSpec((nb, C, t), lambda n, i: (n, 0, i)),
                w_spec,
                pl.BlockSpec(memory_space=pltpu.MemorySpace.SMEM),
            ],
            out_specs=pl.BlockSpec((nb, C, t), lambda n, i: (n, 0, i)),
        ),
        compiler_params=pltpu.CompilerParams(
            dimension_semantics=("parallel", "parallel"),
            vmem_limit_bytes=vmem_limit),
    )(x, w_arg, b_s)

    return out.reshape(N, C, H, W)


# ----------------------------- self-test -------------------------------------


def _reference(x, w, b):
    # Exact f32 channel reduce (no MXU) so the tolerance only covers the kernel.
    C = x.shape[1]
    y = jnp.sum(x.astype(jnp.float32) * w.reshape(1, C, 1, 1).astype(jnp.float32),
                axis=1, keepdims=True) + b[0]
    return (x.astype(jnp.float32) * jnp.tanh(y) * jax.nn.sigmoid(y)).astype(x.dtype)


if __name__ == "__main__":
    key = jax.random.PRNGKey(0)

    # --- small shapes (batched / VPU path), per the module spec -------------
    k_x, k_w, k_b, key = *jax.random.split(key, 3), jax.random.split(key, 4)[3]
    N, C, H, W = 2, 4, 16, 16
    x = jax.random.normal(k_x, (N, C, H, W), dtype=jnp.float32)
    w = jax.random.normal(k_w, (1, C, 1, 1), dtype=jnp.float32) * 0.5
    b = jax.random.normal(k_b, (1,), dtype=jnp.float32) * 0.1

    out = jax.block_until_ready(attention_forward(x, w, b))
    ref = _reference(x, w, b)
    assert out.shape == (N, C, H, W)
    assert jnp.allclose(out, ref, atol=1e-5, rtol=1e-5)

    # --- larger-C case (MXU-dot path, ragged HW tiles: 33*33 = 1089) --------
    k_x2, k_w2, k_b2 = jax.random.split(key, 3)
    N2, C2, H2, W2 = 1, 512, 33, 33
    x2 = jax.random.normal(k_x2, (N2, C2, H2, W2), dtype=jnp.float32)
    w2 = jax.random.normal(k_w2, (1, C2, 1, 1), dtype=jnp.float32) * 0.05
    b2 = jax.random.normal(k_b2, (1,), dtype=jnp.float32) * 0.1

    out2 = jax.block_until_ready(attention_forward(x2, w2, b2))
    ref2 = _reference(x2, w2, b2)
    assert out2.shape == (N2, C2, H2, W2)
    assert jnp.allclose(out2, ref2, atol=1e-3, rtol=1e-3)

    print("KERNEL_OK")
</pallas_src>

<mosaic_0001>
module attributes {stable_mosaic.version = 11 : i64} {
  func.func @_attention_kernel_dot(%arg0: i32, %arg1: i32, %arg2: memref<1x4x256xf32, #tpu.memory_space<vmem>>, %arg3: memref<1x4xf32, #tpu.memory_space<vmem>>, %arg4: memref<1xf32, #tpu.memory_space<smem>>, %arg5: memref<1x4x256xf32, #tpu.memory_space<vmem>>) attributes {dimension_semantics = [#tpu.dimension_semantics<parallel>, #tpu.dimension_semantics<parallel>], iteration_bounds = array<i64: 2, 1>, scalar_prefetch = 0 : i64, scratch_operands = 0 : i64, tpu.core_type = #tpu.core_type<tc>, window_params = [{transform_indices = @transform_0, window_bounds = array<i64: 1, 4, 256>}, {pipeline_mode = #tpu.pipeline_mode<synchronous>, transform_indices = @transform_1, window_bounds = array<i64: 1, 4>}, {transform_indices = @transform_2, window_bounds = array<i64: 1>}, {transform_indices = @transform_3, window_bounds = array<i64: 1, 4, 256>}]} {
    %c0 = arith.constant 0 : index
    %c0_0 = arith.constant 0 : index
    %c0_1 = arith.constant 0 : index
    %0 = vector.load %arg2[%c0, %c0_0, %c0_1] : memref<1x4x256xf32, #tpu.memory_space<vmem>>, vector<1x4x256xf32>
    %1 = vector.shape_cast %0 : vector<1x4x256xf32> to vector<4x256xf32>
    %c0_2 = arith.constant 0 : index
    %c0_3 = arith.constant 0 : index
    %2 = vector.load %arg3[%c0_2, %c0_3] : memref<1x4xf32, #tpu.memory_space<vmem>>, vector<1x4xf32>
    %cst = arith.constant dense<0.000000e+00> : vector<1x256xf32>
    %3 = tpu.matmul %2, %1, %cst {dimension_numbers = #tpu.dot_dimension_numbers<[1], [0], [0], [1], [0, 0, 1, 1], [], []>} : vector<1x4xf32>, vector<4x256xf32>, vector<1x256xf32> -> vector<1x256xf32>
    %c0_4 = arith.constant 0 : index
    %4 = memref.load %arg4[%c0_4] : memref<1xf32, #tpu.memory_space<smem>>
    %5 = vector.broadcast %4 : f32 to vector<1x256xf32>
    %6 = arith.addf %3, %5 : vector<1x256xf32>
    %7 = math.tanh %6 : vector<1x256xf32>
    %8 = arith.negf %6 : vector<1x256xf32>
    %9 = math.exp %8 : vector<1x256xf32>
    %cst_5 = arith.constant 1.000000e+00 : f32
    %10 = vector.broadcast %cst_5 : f32 to vector<1x256xf32>
    %11 = arith.addf %10, %9 : vector<1x256xf32>
    %12 = arith.divf %10, %11 : vector<1x256xf32>
    %13 = arith.mulf %7, %12 : vector<1x256xf32>
    %14 = vector.broadcast %13 : vector<1x256xf32> to vector<4x256xf32>
    %15 = arith.mulf %1, %14 : vector<4x256xf32>
    %c0_6 = arith.constant 0 : index
    %c0_7 = arith.constant 0 : index
    %c0_8 = arith.constant 0 : index
    %16 = vector.load %arg5[%c0_6, %c0_7, %c0_8] : memref<1x4x256xf32, #tpu.memory_space<vmem>>, vector<1x4x256xf32>
    %17 = vector.shape_cast %16 : vector<1x4x256xf32> to vector<4x256xf32>
    %18 = vector.shape_cast %15 : vector<4x256xf32> to vector<1x4x256xf32>
    tpu.vector_store %arg5[%c0_6, %c0_7, %c0_8], %18 {strides = array<i32>} : memref<1x4x256xf32, #tpu.memory_space<vmem>>, vector<1x4x256xf32>,
    return
  }
  func.func @transform_0(%arg0: i32, %arg1: i32) -> (i32, i32, i32) {
    %c0_i32 = arith.constant 0 : i32
    %c0_i32_0 = arith.constant 0 : i32
    return %arg0, %c0_i32, %arg1 : i32, i32, i32
  }
  func.func @transform_1(%arg0: i32, %arg1: i32) -> (i32, i32) {
    %c0_i32 = arith.constant 0 : i32
    %c0_i32_0 = arith.constant 0 : i32
    %c0_i32_1 = arith.constant 0 : i32
    return %c0_i32, %c0_i32_0 : i32, i32
  }
  func.func @transform_2(%arg0: i32, %arg1: i32) -> i32 {
    %c0_i32 = arith.constant 0 : i32
    %c0_i32_0 = arith.constant 0 : i32
    return %c0_i32 : i32
  }
  func.func @transform_3(%arg0: i32, %arg1: i32) -> (i32, i32, i32) {
    %c0_i32 = arith.constant 0 : i32
    %c0_i32_0 = arith.constant 0 : i32
    return %arg0, %c0_i32, %arg1 : i32, i32, i32
  }
}

</mosaic_0001>

<llo_original>
// kernel: tpu_custom_call.1
$region0: #{tpu_custom_call.1}
  #allocation0 [shape = 'u32[]', space=smem, size = 0x4, offset = 0x4, fixed_abs, tag = 'smem constant byte address 0x4 - core index']
  #allocation1 [shape = 'u32[144,128]{1,0:T(1,128)}', space=vmem, size = 0x12000, scoped, tag = 'internal scratch']
  #allocation2 [shape = 'f32[1]{0:T(128)S(6)}', space=smem, size = 0x200, scoped, tag = 'scoped memory for tpu_custom_call.1']
  %s0 = inlined_call_operand.hbm [shape: f32[2,4,256], index: 0, kind: input, shape index: {}]
  %s1 = inlined_call_operand.vmem [shape: f32[1,4], index: 1, kind: input, shape index: {}]
  %s2 = inlined_call_operand.<no memory space> [shape: f32[1], index: 2, kind: input, shape index: {}]
  %s3 = inlined_call_operand.hbm [shape: f32[2,4,256], index: 3, kind: output, shape index: {}]
  %s4 = sld [smem:[#allocation0]]
  $region49: #{tpu_custom_call.1} parent=0
    _
  %s6 = ssub.s32 1, %s4
  %s7 = scalar_select 0, %s6, %s4
  %8 = sst [smem:[#allocation2]] %s2
  $region1: #{tpu_custom_call.1} parent=0
    #allocation3 [shape = 'u8[8192]{0}', space=vmem, size = 0x2000, scoped, tag = 'input window, operand 0']
    #allocation4 [shape = 's32[2]{0}', space=sflag, size = 0x8, scoped, tag = 'scoped memory for tpu_custom_call.1']
    #allocation5 [shape = 's32[2]{0}', space=sflag, size = 0x8, scoped, tag = 'scoped memory for tpu_custom_call.1']
    #allocation6 [shape = 'u8[8192]{0}', space=vmem, size = 0x2000, scoped, tag = 'output window, operand 0']
    %9 = vsyncpa [#allocation4], 0
    %s10 = scalar_lea.sflag [#allocation4], 1
    %11 = vsyncpa %s10, 0
    %12 = vsyncpa [#allocation5], 0
    %s13 = scalar_lea.sflag [#allocation5], 1
    %14 = vsyncpa %s13, 0
    loop: start=0, step=1, limit=4
    $region2: #{tpu_custom_call.1} parent=1 // loop_pre_header
      _
    $region3: #{tpu_custom_call.1} parent=1 // loop_header
      %s16 = sphi 0, %s20
      %p17 = scmp.ge.s32.totalorder %s16, 4
      %s23 = sphi 0, %s35
      %s24 = sphi 0, %s31
      %s25 = sphi 0, %s23
      %s26 = sphi 0, %s24
      %s27 = sphi 0, %s25
      %s28 = sphi 0, %s26
      %s40 = sphi 0, %s42
      %s43 = sphi 0, %s40
      %s44 = sphi 0, %s43
      %s60 = sphi 0, %s44
      %s64 = sphi 0, %s64
      %s66 = sphi 0, %s64
      %s67 = sphi 0, %s66
      %s81 = sphi 0, %s67
      %s85 = sphi 0, %s85
      %s87 = sphi 0, %s85
      %s88 = sphi 0, %s87
      %s102 = sphi 0, %s88
      %s110 = sphi 0, %s112
      %s113 = sphi 0, %s110
      %s114 = sphi 0, %s113
      %s130 = sphi 0, %s114
    $region4: #{tpu_custom_call.1} parent=1 // loop_header_branch
      %19 = sbr.rel (%p17) target = $region8
    $region5: #{tpu_custom_call.1} parent=1 // loop_body
      %s21 = ssub.s32 %s16, 1
      %s22 = ssub.s32 %s16, 2
      %s29 = sadd.s32 1, %s24
      %p30 = scmp.ge.s32.totalorder %s29, 1
      %s31 = scalar_select %p30, 0, %s29
      %s32 = sadd.s32 1, %s23
      %s33 = scalar_select %p30, %s32, %s23
      %p34 = scmp.ge.s32.totalorder %s33, 2
      %s35 = scalar_select %p34, 0, %s33
      %s36 = ssub.s32 %s23, %s35
      %s37 = ssub.s32 %s24, %s31
      %s38 = sor.u32 %s36, %s37
      %p39 = scmp.eq.s32.totalorder %s38, 0
      %s41 = sadd.s32 %s40, 1
      %s42 = scalar_select %p39, %s40, %s41
      %p45 = pneg %p39
      %p46 = scmp.eq.s32.totalorder %s16, 1
      %p47 = por %p45, %p46
      %p48 = scmp.ne.s32.totalorder %s40, %s43
      %p49 = scmp.eq.s32.totalorder %s16, 0
      %p50 = por %p48, %p49
      %p51 = scmp.ne.s32.totalorder %s40, %s43
      %p52 = scmp.eq.s32.totalorder %s21, 1
      %p53 = por %p51, %p52
      %p54 = scmp.ne.s32.totalorder %s43, %s44
      %p55 = scmp.eq.s32.totalorder %s21, 0
      %p56 = por %p54, %p55
      %p57 = scmp.ne.s32.totalorder %s43, %s44
      %p58 = scmp.eq.s32.totalorder %s22, 1
      %p59 = por %p57, %p58
      %p61 = scmp.ne.s32.totalorder %s44, %s60
      %p62 = scmp.eq.s32.totalorder %s22, 0
      %p63 = por %p61, %p62
      %s65 = sadd.s32 %s64, 1
      %p68 = scmp.eq.s32.totalorder %s16, 1
      %p69 = scmp.ne.s32.totalorder %s64, %s66
      %p70 = scmp.eq.s32.totalorder %s16, 0
      %p71 = por %p69, %p70
      %p72 = scmp.ne.s32.totalorder %s64, %s66
      %p73 = scmp.eq.s32.totalorder %s21, 1
      %p74 = por %p72, %p73
      %p75 = scmp.ne.s32.totalorder %s66, %s67
      %p76 = scmp.eq.s32.totalorder %s21, 0
      %p77 = por %p75, %p76
      %p78 = scmp.ne.s32.totalorder %s66, %s67
      %p79 = scmp.eq.s32.totalorder %s22, 1
      %p80 = por %p78, %p79
      %p82 = scmp.ne.s32.totalorder %s67, %s81
      %p83 = scmp.eq.s32.totalorder %s22, 0
      %p84 = por %p82, %p83
      %s86 = sadd.s32 %s85, 1
      %p89 = scmp.eq.s32.totalorder %s16, 1
      %p90 = scmp.ne.s32.totalorder %s85, %s87
      %p91 = scmp.eq.s32.totalorder %s16, 0
      %p92 = por %p90, %p91
      %p93 = scmp.ne.s32.totalorder %s85, %s87
      %p94 = scmp.eq.s32.totalorder %s21, 1
      %p95 = por %p93, %p94
      %p96 = scmp.ne.s32.totalorder %s87, %s88
      %p97 = scmp.eq.s32.totalorder %s21, 0
      %p98 = por %p96, %p97
      %p99 = scmp.ne.s32.totalorder %s87, %s88
      %p100 = scmp.eq.s32.totalorder %s22, 1
      %p101 = por %p99, %p100
      %p103 = scmp.ne.s32.totalorder %s88, %s102
      %p104 = scmp.eq.s32.totalorder %s22, 0
      %p105 = por %p103, %p104
      %s106 = ssub.s32 %s23, %s35
      %s107 = ssub.s32 %s24, %s31
      %s108 = sor.u32 %s106, %s107
      %p109 = scmp.eq.s32.totalorder %s108, 0
      %s111 = sadd.s32 %s110, 1
      %s112 = scalar_select %p109, %s110, %s111
      %p115 = pneg %p109
      %p116 = scmp.eq.s32.totalorder %s16, 1
      %p117 = por %p115, %p116
      %p118 = scmp.ne.s32.totalorder %s110, %s113
      %p119 = scmp.eq.s32.totalorder %s16, 0
      %p120 = por %p118, %p119
      %p121 = scmp.ne.s32.totalorder %s110, %s113
      %p122 = scmp.eq.s32.totalorder %s21, 1
      %p123 = por %p121, %p122
      %p124 = scmp.ne.s32.totalorder %s113, %s114
      %p125 = scmp.eq.s32.totalorder %s21, 0
      %p126 = por %p124, %p125
      %p127 = scmp.ne.s32.totalorder %s113, %s114
      %p128 = scmp.eq.s32.totalorder %s22, 1
      %p129 = por %p127, %p128
      %p131 = scmp.ne.s32.totalorder %s114, %s130
      %p132 = scmp.eq.s32.totalorder %s22, 0
      %p133 = por %p131, %p132
      %p134 = scmp.le.s32.totalorder 1, %s16
      %p135 = scmp.lt.s32.totalorder %s16, 3
      %p136 = pnand %p134, %p135
      %p137 = pneg %p136
      // Predicated region
      $region9: #{tpu_custom_call.1} parent=5 // pred_check
        _
      $region10: #{tpu_custom_call.1} parent=5 // pred_check_branch
        %139 = sbr.rel (%p136) target = $region12
      $region11: #{tpu_custom_call.1} parent=5 // pred_region
        %s140 = ssub.s32 %s16, 1
        // Predicated region
        $region13: #{tpu_custom_call.1} parent=11 // pred_check
          %p141 = pneg %p77
        $region14: #{tpu_custom_call.1} parent=11 // pred_check_branch
          %143 = sbr.rel (%p141) target = $region16
        $region15: #{tpu_custom_call.1} parent=11 // pred_region
          _
        $region16: #{tpu_custom_call.1} parent=11 // pred_fallthru
          _
        // Predicated region
        $region17: #{tpu_custom_call.1} parent=11 // pred_check
          %p144 = pneg %p98
        $region18: #{tpu_custom_call.1} parent=11 // pred_check_branch
          %146 = sbr.rel (%p144) target = $region20
        $region19: #{tpu_custom_call.1} parent=11 // pred_region
          _
        $region20: #{tpu_custom_call.1} parent=11 // pred_fallthru
          _
      $region12: #{tpu_custom_call.1} parent=5 // pred_fallthru
        _
      %p147 = scmp.lt.s32.totalorder %s16, 2
      // Predicated region
      $region21: #{tpu_custom_call.1} parent=5 // pred_check
        %p148 = pneg %p147
      $region22: #{tpu_custom_call.1} parent=5 // pred_check_branch
        %150 = sbr.rel (%p148) target = $region24
      $region23: #{tpu_custom_call.1} parent=5 // pred_region
        // Predicated region
        $region25: #{tpu_custom_call.1} parent=23 // pred_check
          %p151 = pneg %p50
        $region26: #{tpu_custom_call.1} parent=23 // pred_check_branch
          %153 = sbr.rel (%p151) target = $region28
        $region27: #{tpu_custom_call.1} parent=23 // pred_region
          %s154 = sand.u32 %s40, 1
          %s155 = scalar_lea.sflag [#allocation4], %s154
          %s156 = sand.u32 %s40, 1
          %s157 = smul.addr %s156, 8
          %s158 = scalar_lea.vmem [#allocation3], %s157
          %s159 = smul.u32 2, %s24
          %s161 = ssub.s32 128, 128
          %162 = vsyncadd %s155, %s161
          %s163 = smul.addr %s23, 2
          %s164 = sadd.s32 %s159, %s163
          %s165 = smul.addr %s164, 64
          %s166 = scalar_lea.hbm %s0, %s165
          %s168 = sshll.u32 %s158, 4
          %s169 = int_to_ptr.vmem [resolvable:$true] %s168
          %171 = dma.hbm_to_vmem [thread:$0]  %s166, 128, %s169, %s155
        $region28: #{tpu_custom_call.1} parent=23 // pred_fallthru
          _
      $region24: #{tpu_custom_call.1} parent=5 // pred_fallthru
        _
      %p172 = scmp.le.s32.totalorder 1, %s16
      %p173 = scmp.lt.s32.totalorder %s16, 3
      %p174 = pnand %p172, %p173
      %p175 = pneg %p174
      // Predicated region
      $region29: #{tpu_custom_call.1} parent=5 // pred_check
        _
      $region30: #{tpu_custom_call.1} parent=5 // pred_check_branch
        %177 = sbr.rel (%p174) target = $region32
      $region31: #{tpu_custom_call.1} parent=5 // pred_region
        %s178 = ssub.s32 %s16, 1
        %s179 = sand.u32 %s43, 1
        %s180 = scalar_lea.sflag [#allocation4], %s179
        %s181 = sand.u32 %s43, 1
        %s182 = smul.addr %s181, 8
        %s183 = scalar_lea.vmem [#allocation3], %s182
        // Predicated region
        $region33: #{tpu_custom_call.1} parent=31 // pred_check
          %p184 = pneg %p56
        $region34: #{tpu_custom_call.1} parent=31 // pred_check_branch
          %186 = sbr.rel (%p184) target = $region36
        $region35: #{tpu_custom_call.1} parent=31 // pred_region
          %187 = dma.done %s180, 128
        $region36: #{tpu_custom_call.1} parent=31 // pred_fallthru
          _
        %s188 = sand.u32 %s43, 1
        %s189 = scalar_lea.sflag [#allocation4], %s188
        %s190 = sand.u32 %s43, 1
        %s191 = smul.addr %s190, 8
        %s192 = scalar_lea.vmem [#allocation3], %s191
        %p193 = pneg %p56
        %p194 = pneg %p53
        %p195 = pneg %p77
        %p196 = pneg %p74
        %p197 = pneg %p98
        %p198 = pneg %p95
        %p199 = pneg %p126
        %p200 = pneg %p123
        %s201 = sand.u32 %s113, 1
        %s202 = scalar_lea.sflag [#allocation5], %s201
        %s203 = sand.u32 %s113, 1
        %s204 = smul.addr %s203, 8
        %s205 = scalar_lea.vmem [#allocation6], %s204
        %s206 = smul.u32 2, %s26
        %s207 = smul.u32 2, %s26
        %v208 = vld [vmem:[%s183] sm:$0xff]
        %v209 = vld [vmem:[%s1] sm:$0x1]
        %s210 = sld [smem:[#allocation2]]
        %v211 = vstv %s210
        %v213 = vcombine.high %v208, %v208
        %vm214 = vcmask 31744
        %v216 = vsel %vm214, %v209, 0
        %vm218 = vcmask 1043456
        %v219 = vsel %vm218, %v208, 0
        %v221 = vsel %vm218, %v213, 0
        %223 = vmatprep.subr.mxu0 %v221
        %224 = vmatpush1.msra.mxu0 %v219
        %225 = vmatprep.subr.mxu0 0.0
        %226 = vmatpush1.msra.mxu0 0.0
        %227 = vmatprep.subr.mxu0 0.0
        %228 = vmatpush1.msra.mxu0 0.0
        %229 = vmatprep.subr.mxu0 0.0
        %230 = vmatpush1.msra.mxu0 0.0
        %231 = vmatprep.subr.mxu0 0.0
        %232 = vmatpush1.msra.mxu0 0.0
        %233 = vmatprep.subr.mxu0 0.0
        %234 = vmatpush1.msra.mxu0 0.0
        %235 = vmatprep.subr.mxu0 0.0
        %236 = vmatpush1.msra.mxu0 0.0
        %237 = vmatprep.subr.mxu0 0.0
        %238 = vmatpush1.msra.mxu0 0.0
        %239 = vmatprep.subr.mxu0 0.0
        %240 = vmatpush1.msra.mxu0 0.0
        %241 = vmatprep.subr.mxu0 0.0
        %242 = vmatpush1.msra.mxu0 0.0
        %243 = vmatprep.subr.mxu0 0.0
        %244 = vmatpush1.msra.mxu0 0.0
        %245 = vmatprep.subr.mxu0 0.0
        %246 = vmatpush1.msra.mxu0 0.0
        %247 = vmatprep.subr.mxu0 0.0
        %248 = vmatpush1.msra.mxu0 0.0
        %249 = vmatprep.subr.mxu0 0.0
        %250 = vmatpush1.msra.mxu0 0.0
        %251 = vmatprep.subr.mxu0 0.0
        %252 = vmatpush1.msra.mxu0 0.0
        %253 = vmatprep.subr.mxu0 0.0
        %254 = vmatpush1.msra.mxu0 0.0
        %255 = vmatprep.subr.mxu0 0.0
        %256 = vmatpush1.msra.mxu0 0.0
        %257 = vmatprep.subr.mxu0 0.0
        %258 = vmatpush1.msra.mxu0 0.0
        %259 = vmatprep.subr.mxu0 0.0
        %260 = vmatpush1.msra.mxu0 0.0
        %261 = vmatprep.subr.mxu0 0.0
        %262 = vmatpush1.msra.mxu0 0.0
        %263 = vmatprep.subr.mxu0 0.0
        %264 = vmatpush1.msra.mxu0 0.0
        %265 = vmatprep.subr.mxu0 0.0
        %266 = vmatpush1.msra.mxu0 0.0
        %267 = vmatprep.subr.mxu0 0.0
        %268 = vmatpush1.msra.mxu0 0.0
        %269 = vmatprep.subr.mxu0 0.0
        %270 = vmatpush1.msra.mxu0 0.0
        %271 = vmatprep.subr.mxu0 0.0
        %272 = vmatpush1.msra.mxu0 0.0
        %273 = vmatprep.subr.mxu0 0.0
        %274 = vmatpush1.msra.mxu0 0.0
        %275 = vmatprep.subr.mxu0 0.0
        %276 = vmatpush1.msra.mxu0 0.0
        %277 = vmatprep.subr.mxu0 0.0
        %278 = vmatpush1.msra.mxu0 0.0
        %279 = vmatprep.subr.mxu0 0.0
        %280 = vmatpush1.msra.mxu0 0.0
        %281 = vmatprep.subr.mxu0 0.0
        %282 = vmatpush1.msra.mxu0 0.0
        %283 = vmatprep.subr.mxu0 0.0
        %284 = vmatpush1.msra.mxu0 0.0
        %285 = vmatprep.subr.mxu0 0.0
        %286 = vmatpush1.msra.mxu0 0.0
        %287 = vmatprep.mubr.f32.mxu0 0.0
        %288 = vmatmul.mubr.f32.gmra.mrb[0].mxu0 %v216
        %v289 = vpop.f32.mrb[0].mxu0
        %v290 = vadd.f32 %v211, %v289
        %v291 = vpop.f32.mrb[0].mxu0
        %v292 = vadd.f32 %v211, %v291
        %293 = vdwg.mxu0
        %v294 = vtanh.pop %v290
        %v295 = vtanh.pop %v292
        %v296 = vxor.u32 %v290, 2147483648
        %v297 = vxor.u32 %v292, 2147483648
        %v298 = vmul.f32 %v296, 1.442695
        %v299 = vpow.pop %v298
        %v300 = vmul.f32 %v297, 1.442695
        %v301 = vpow.pop %v300
        %v302 = vadd.f32 %v299, 1.0
        %v303 = vadd.f32 %v301, 1.0
        %v304 = vrcp.pop %v302
        %v305 = vmul.f32 1.0, %v304
        %v306 = vrcp.pop %v303
        %v307 = vmul.f32 1.0, %v306
        %v308 = vmul.f32 %v294, %v305
        %v309 = vmul.f32 %v295, %v307
        %v310 = vlaneseq
        %v311 = vshrl.u32 %v310, 7
        %v312 = vsub.s32 0, %v311
        %v313 = vrot.slane %v308, %v312
        %v314 = vlaneseq
        %v315 = vshrl.u32 %v314, 7
        %v316 = vsub.s32 0, %v315
        %v317 = vrot.slane %v309, %v316
        %v320 = vcombine.low %v313, %v317
        %v322 = vmul.f32 %v208, %v320
        %323 = vst [vmem:[%s205] sm:$0xff] %v322
        %s324 = sand.u32 %s113, 1
        %s325 = scalar_lea.sflag [#allocation5], %s324
        %s326 = sand.u32 %s113, 1
        %s327 = smul.addr %s326, 8
        %s328 = scalar_lea.vmem [#allocation6], %s327
        // Predicated region
        $region37: #{tpu_custom_call.1} parent=31 // pred_check
          %p329 = pneg %p123
        $region38: #{tpu_custom_call.1} parent=31 // pred_check_branch
          %331 = sbr.rel (%p329) target = $region40
        $region39: #{tpu_custom_call.1} parent=31 // pred_region
          %s332 = smul.u32 2, %s26
          %s334 = ssub.s32 128, 128
          %335 = vsyncadd %s325, %s334
          %s336 = smul.addr %s25, 2
          %s337 = sadd.s32 %s332, %s336
          %s338 = smul.addr %s337, 64
          %s339 = scalar_lea.hbm %s3, %s338
          %s341 = sshll.u32 %s328, 4
          %s342 = int_to_ptr.vmem [resolvable:$true] %s341
          %344 = dma.vmem_to_hbm [thread:$0]  %s342, 128, %s339, %s325
        $region40: #{tpu_custom_call.1} parent=31 // pred_fallthru
          _
      $region32: #{tpu_custom_call.1} parent=5 // pred_fallthru
        _
      %p345 = scmp.le.s32.totalorder 2, %s16
      // Predicated region
      $region41: #{tpu_custom_call.1} parent=5 // pred_check
        %p346 = pneg %p345
      $region42: #{tpu_custom_call.1} parent=5 // pred_check_branch
        %348 = sbr.rel (%p346) target = $region44
      $region43: #{tpu_custom_call.1} parent=5 // pred_region
        %s349 = ssub.s32 %s16, 2
        // Predicated region
        $region45: #{tpu_custom_call.1} parent=43 // pred_check
          %p350 = pneg %p129
        $region46: #{tpu_custom_call.1} parent=43 // pred_check_branch
          %352 = sbr.rel (%p350) target = $region48
        $region47: #{tpu_custom_call.1} parent=43 // pred_region
          %s353 = sand.u32 %s114, 1
          %s354 = scalar_lea.sflag [#allocation5], %s353
          %s355 = sand.u32 %s114, 1
          %s356 = smul.addr %s355, 8
          %s357 = scalar_lea.vmem [#allocation6], %s356
          %358 = dma.done %s354, 128
        $region48: #{tpu_custom_call.1} parent=43 // pred_fallthru
          _
      $region44: #{tpu_custom_call.1} parent=5 // pred_fallthru
        _
    $region6: #{tpu_custom_call.1} parent=1 // loop_footer
      %s20 = sadd.s32 1, %s16
    $region7: #{tpu_custom_call.1} parent=1 // loop_footer_branch
      %15 = sbr.rel target = $region3
    $region8: #{tpu_custom_call.1} parent=1 // loop_exit
      _
    %359 = vsyncpa [#allocation4], 1
    %s360 = scalar_lea.sflag [#allocation4], 1
    %361 = vsyncpa %s360, 1
    %362 = vsyncpa [#allocation5], 1
    %s363 = scalar_lea.sflag [#allocation5], 1
    %364 = vsyncpa %s363, 1

</llo_original>
